<compile_context>
chip_gen: v5e
topology: v5e:2x2
jax: 0.10.0
libtpu: 0.0.40
codegen_flags: <defaults>
</compile_context>

<pallas_src>
import functools

import jax
import jax.numpy as jnp
from jax.experimental import pallas as pl
from jax.experimental.pallas import tpu as pltpu

# Per-input-buffer VMEM cap; x2 for double-buffering => <= 8 MiB of input
# VMEM, safe under every generation's scoped-VMEM default.
_VMEM_BLOCK_BYTES = 4 * 1024 * 1024
_T_TILE_MAX = 2048   # keep per-step latency reasonable for huge T
_T_TILE_MIN = 256    # rows we insist on when deciding whether full-C fits


def _linear_softpool_kernel(x_ref, o_ref, num_ref, den_ref, *, T, t_tile, mask_t):
    # x_ref:   (b_tile, t_tile, c_tile) tile of time_decision
    # o_ref:   (b_tile, 1, c_tile) pooled output tile (resident across T axis)
    # num_ref: (b_tile, 1, c_tile) f32 accumulator for sum(x**2)
    # den_ref: (b_tile, 1, c_tile) f32 accumulator for sum(x)
    t = pl.program_id(2)

    @pl.when(t == 0)
    def _():
        num_ref[...] = jnp.zeros_like(num_ref)
        den_ref[...] = jnp.zeros_like(den_ref)

    x = x_ref[...].astype(jnp.float32)              # (b_tile, t_tile, c_tile)
    if mask_t:
        # Tail tile of the cdiv'd T grid: rows past T contain unspecified
        # data (NOT guaranteed zero) and must be excluded from both sums.
        rows = jax.lax.broadcasted_iota(jnp.int32, x.shape, 1)
        x = jnp.where(rows + t * t_tile < T, x, 0.0)

    # Fused single pass over the streamed tile.
    num_ref[...] += jnp.sum(x * x, axis=1, keepdims=True)
    den_ref[...] += jnp.sum(x, axis=1, keepdims=True)

    @pl.when(t == pl.num_programs(2) - 1)
    def _():
        o_ref[...] = (num_ref[...] / den_ref[...]).astype(o_ref.dtype)


def _pick_tiles(B, T, C, itemsize):
    """Bytes-capped tile selection (see module docstring)."""
    # --- C (lane) axis: prefer one full, contiguous block. ---
    if C * min(T, _T_TILE_MIN) * itemsize <= _VMEM_BLOCK_BYTES:
        c_tile = C
    else:
        # Gigantic C: 128-lane-multiple tiles (strided DMA).
        # TODO(synk): consider pipeline_mode=pl.Buffered(3) on this rare path.
        c_tile = max(128, (_VMEM_BLOCK_BYTES // (_T_TILE_MIN * itemsize)) // 128 * 128)
    n_c = pl.cdiv(C, c_tile)

    # --- v7x megacore guard: keep >= 2 parallel blocks when it is free. ---
    if B * n_c < 2 and c_tile == C and C >= 256 and C % 256 == 0:
        c_tile = C // 2
        n_c = 2

    # --- Small-problem batch fold: cut grid steps when the grid is tiny. ---
    b_tile = 1
    if (C <= 128 and B <= 8
            and B * T * C * itemsize <= 16 * 1024 * 1024
            and B * min(T, _T_TILE_MAX) * C * itemsize <= _VMEM_BLOCK_BYTES):
        b_tile = B

    # --- T (reduction) axis: largest multiple-of-8 tile under the cap. ---
    t_cap = _VMEM_BLOCK_BYTES // (b_tile * c_tile * itemsize)
    t_cap = max(8, min(_T_TILE_MAX, (t_cap // 8) * 8))
    t_tile = T if T <= t_cap else t_cap
    return b_tile, t_tile, c_tile, n_c


def linear_softpool(logits, time_decision, pooldim=1, *, min_pallas_elements=1 << 20):
    """Pallas equivalent of LinearSoftPool()(logits, time_decision)."""
    if pooldim != 1:
        raise NotImplementedError("kernel is specialized to pooldim=1 (time)")
    del logits  # unused by the PyTorch forward as well

    x = time_decision
    B, T, C = x.shape
    out_dtype = x.dtype

    # Tiny-problem fast path: Pallas' fixed per-call cost dwarfs ~ns of work.
    if B * T * C < min_pallas_elements:
        xf = x.astype(jnp.float32)
        return ((xf * xf).sum(axis=1) / xf.sum(axis=1)).astype(out_dtype)

    itemsize = x.dtype.itemsize
    b_tile, t_tile, c_tile, n_c = _pick_tiles(B, T, C, itemsize)
    n_b = B // b_tile                       # b_tile is 1 or B -> exact
    n_t = pl.cdiv(T, t_tile)
    mask_t = (T % t_tile) != 0
    c_out = n_c * c_tile                    # == C unless C had to be lane-tiled

    kernel = functools.partial(
        _linear_softpool_kernel, T=T, t_tile=t_tile, mask_t=mask_t)

    out = pl.pallas_call(
        kernel,
        out_shape=jax.ShapeDtypeStruct((B, 1, c_out), out_dtype),
        grid=(n_b, n_c, n_t),
        in_specs=[pl.BlockSpec((b_tile, t_tile, c_tile),
                               lambda b, c, t: (b, t, c))],
        out_specs=pl.BlockSpec((b_tile, 1, c_tile),
                               lambda b, c, t: (b, 0, c)),
        scratch_shapes=[
            pltpu.VMEM((b_tile, 1, c_tile), jnp.float32),
            pltpu.VMEM((b_tile, 1, c_tile), jnp.float32),
        ],
        compiler_params=pltpu.CompilerParams(
            dimension_semantics=("parallel", "parallel", "arbitrary"),
        ),
    )(x)

    out = out[:, 0]
    if c_out != C:
        out = out[:, :C]    # drop lanes coming from the partial last C tile
    return out


def _linear_softpool_reference(logits, time_decision, pooldim=1):
    """Pure-JAX reference matching the PyTorch forward."""
    del logits
    x = time_decision
    return (x ** 2).sum(axis=pooldim) / x.sum(axis=pooldim)


if __name__ == "__main__":
    key = jax.random.PRNGKey(0)
    k1, k2, k3, k4 = jax.random.split(key, 4)

    # --- Small shape consistent with the module (batch=2, time=8, classes=32) ---
    B, T, C = 2, 8, 32
    # time_decision is a sigmoid output in the original model -> positive probs.
    time_decision = jax.random.uniform(
        k1, (B, T, C), dtype=jnp.float32, minval=0.01, maxval=1.0)
    logits = jax.random.normal(k2, (B, T, C), dtype=jnp.float32)  # unused
    ref = _linear_softpool_reference(logits, time_decision)

    # 1) Force the Pallas kernel at the tiny shape (exercises batch fold).
    out = jax.block_until_ready(
        linear_softpool(logits, time_decision, min_pallas_elements=0))
    assert out.shape == (B, C), out.shape
    assert jnp.allclose(out, ref, atol=1e-5, rtol=1e-5), "mismatch (tiny, kernel)"

    # 2) Default wrapper at the tiny shape takes the pure-JAX fast path.
    out_fast = jax.block_until_ready(linear_softpool(logits, time_decision))
    assert jnp.allclose(out_fast, ref, atol=1e-5, rtol=1e-5), "mismatch (fast path)"

    # 3) Larger, non-tile-aligned shape: full-C contiguous blocks (C=527),
    #    two T steps with in-kernel tail masking (T=2000 vs t_tile=1984).
    B2, T2, C2 = 3, 2000, 527
    td2 = jax.random.uniform(k3, (B2, T2, C2), dtype=jnp.float32,
                             minval=0.01, maxval=1.0)
    out2 = jax.block_until_ready(linear_softpool(td2, td2))
    ref2 = _linear_softpool_reference(td2, td2)
    assert out2.shape == (B2, C2), out2.shape
    assert jnp.allclose(out2, ref2, atol=1e-5, rtol=1e-4), "mismatch (full-C + T tail)"

    # 4) Huge-C fallback path: C > full-C budget -> 128-multiple lane tiles,
    #    partial last C tile sliced off after the kernel.
    B3, T3, C3 = 1, 256, 4224
    td3 = jax.random.uniform(k4, (B3, T3, C3), dtype=jnp.float32,
                             minval=0.01, maxval=1.0)
    out3 = jax.block_until_ready(linear_softpool(td3, td3, min_pallas_elements=0))
    ref3 = _linear_softpool_reference(td3, td3)
    assert out3.shape == (B3, C3), out3.shape
    assert jnp.allclose(out3, ref3, atol=1e-5, rtol=1e-4), "mismatch (tiled-C)"

    print("KERNEL_OK")
</pallas_src>

<mosaic_0001>
module attributes {stable_mosaic.version = 11 : i64} {
  func.func @_linear_softpool_kernel(%arg0: i32, %arg1: i32, %arg2: i32, %arg3: memref<2x8x32xf32, #tpu.memory_space<vmem>>, %arg4: memref<2x1x32xf32, #tpu.memory_space<vmem>>, %arg5: memref<2x1x32xf32, #tpu.memory_space<vmem>>, %arg6: memref<2x1x32xf32, #tpu.memory_space<vmem>>) attributes {dimension_semantics = [#tpu.dimension_semantics<parallel>, #tpu.dimension_semantics<parallel>, #tpu.dimension_semantics<arbitrary>], iteration_bounds = array<i64: 1, 1, 1>, scalar_prefetch = 0 : i64, scratch_operands = 2 : i64, tpu.core_type = #tpu.core_type<tc>, window_params = [{transform_indices = @transform_0, window_bounds = array<i64: 2, 8, 32>}, {transform_indices = @transform_1, window_bounds = array<i64: 2, 1, 32>}]} {
    %c0_i32 = arith.constant 0 : i32
    %0 = arith.cmpi eq, %arg2, %c0_i32 : i32
    %1 = arith.extui %0 : i1 to i32
    %c0_i32_0 = arith.constant 0 : i32
    %2 = arith.cmpi ne, %1, %c0_i32_0 : i32
    scf.if %2 {
      %cst_18 = arith.constant 0.000000e+00 : f32
      %18 = vector.broadcast %cst_18 : f32 to vector<2x1x32xf32>
      %c0_19 = arith.constant 0 : index
      %c0_20 = arith.constant 0 : index
      %c0_21 = arith.constant 0 : index
      %19 = vector.load %arg5[%c0_19, %c0_20, %c0_21] : memref<2x1x32xf32, #tpu.memory_space<vmem>>, vector<2x1x32xf32>
      tpu.vector_store %arg5[%c0_19, %c0_20, %c0_21], %18 {strides = array<i32>} : memref<2x1x32xf32, #tpu.memory_space<vmem>>, vector<2x1x32xf32>,
      %cst_22 = arith.constant 0.000000e+00 : f32
      %20 = vector.broadcast %cst_22 : f32 to vector<2x1x32xf32>
      %c0_23 = arith.constant 0 : index
      %c0_24 = arith.constant 0 : index
      %c0_25 = arith.constant 0 : index
      %21 = vector.load %arg6[%c0_23, %c0_24, %c0_25] : memref<2x1x32xf32, #tpu.memory_space<vmem>>, vector<2x1x32xf32>
      tpu.vector_store %arg6[%c0_23, %c0_24, %c0_25], %20 {strides = array<i32>} : memref<2x1x32xf32, #tpu.memory_space<vmem>>, vector<2x1x32xf32>,
    } else {
    }
    %c0 = arith.constant 0 : index
    %c0_1 = arith.constant 0 : index
    %c0_2 = arith.constant 0 : index
    %3 = vector.load %arg3[%c0, %c0_1, %c0_2] : memref<2x8x32xf32, #tpu.memory_space<vmem>>, vector<2x8x32xf32>
    %c0_3 = arith.constant 0 : index
    %c0_4 = arith.constant 0 : index
    %c0_5 = arith.constant 0 : index
    %4 = vector.load %arg5[%c0_3, %c0_4, %c0_5] : memref<2x1x32xf32, #tpu.memory_space<vmem>>, vector<2x1x32xf32>
    %5 = arith.mulf %3, %3 : vector<2x8x32xf32>
    %cst = arith.constant dense<0.000000e+00> : vector<2x32xf32>
    %6 = vector.multi_reduction <add>, %5, %cst [1] : vector<2x8x32xf32> to vector<2x32xf32>
    %7 = vector.shape_cast %6 : vector<2x32xf32> to vector<2x1x32xf32>
    %8 = arith.addf %4, %7 : vector<2x1x32xf32>
    %c0_6 = arith.constant 0 : index
    %c0_7 = arith.constant 0 : index
    %c0_8 = arith.constant 0 : index
    %9 = vector.load %arg5[%c0_6, %c0_7, %c0_8] : memref<2x1x32xf32, #tpu.memory_space<vmem>>, vector<2x1x32xf32>
    tpu.vector_store %arg5[%c0_6, %c0_7, %c0_8], %8 {strides = array<i32>} : memref<2x1x32xf32, #tpu.memory_space<vmem>>, vector<2x1x32xf32>,
    %c0_9 = arith.constant 0 : index
    %c0_10 = arith.constant 0 : index
    %c0_11 = arith.constant 0 : index
    %10 = vector.load %arg6[%c0_9, %c0_10, %c0_11] : memref<2x1x32xf32, #tpu.memory_space<vmem>>, vector<2x1x32xf32>
    %cst_12 = arith.constant dense<0.000000e+00> : vector<2x32xf32>
    %11 = vector.multi_reduction <add>, %3, %cst_12 [1] : vector<2x8x32xf32> to vector<2x32xf32>
    %12 = vector.shape_cast %11 : vector<2x32xf32> to vector<2x1x32xf32>
    %13 = arith.addf %10, %12 : vector<2x1x32xf32>
    %c0_13 = arith.constant 0 : index
    %c0_14 = arith.constant 0 : index
    %c0_15 = arith.constant 0 : index
    %14 = vector.load %arg6[%c0_13, %c0_14, %c0_15] : memref<2x1x32xf32, #tpu.memory_space<vmem>>, vector<2x1x32xf32>
    tpu.vector_store %arg6[%c0_13, %c0_14, %c0_15], %13 {strides = array<i32>} : memref<2x1x32xf32, #tpu.memory_space<vmem>>, vector<2x1x32xf32>,
    %c0_i32_16 = arith.constant 0 : i32
    %15 = arith.cmpi eq, %arg2, %c0_i32_16 : i32
    %16 = arith.extui %15 : i1 to i32
    %c0_i32_17 = arith.constant 0 : i32
    %17 = arith.cmpi ne, %16, %c0_i32_17 : i32
    scf.if %17 {
      %c0_18 = arith.constant 0 : index
      %c0_19 = arith.constant 0 : index
      %c0_20 = arith.constant 0 : index
      %18 = vector.load %arg5[%c0_18, %c0_19, %c0_20] : memref<2x1x32xf32, #tpu.memory_space<vmem>>, vector<2x1x32xf32>
      %c0_21 = arith.constant 0 : index
      %c0_22 = arith.constant 0 : index
      %c0_23 = arith.constant 0 : index
      %19 = vector.load %arg6[%c0_21, %c0_22, %c0_23] : memref<2x1x32xf32, #tpu.memory_space<vmem>>, vector<2x1x32xf32>
      %20 = arith.divf %18, %19 : vector<2x1x32xf32>
      %c0_24 = arith.constant 0 : index
      %c0_25 = arith.constant 0 : index
      %c0_26 = arith.constant 0 : index
      %21 = vector.load %arg4[%c0_24, %c0_25, %c0_26] : memref<2x1x32xf32, #tpu.memory_space<vmem>>, vector<2x1x32xf32>
      tpu.vector_store %arg4[%c0_24, %c0_25, %c0_26], %20 {strides = array<i32>} : memref<2x1x32xf32, #tpu.memory_space<vmem>>, vector<2x1x32xf32>,
    } else {
    }
    return
  }
  func.func @transform_0(%arg0: i32, %arg1: i32, %arg2: i32) -> (i32, i32, i32) {
    %c0_i32 = arith.constant 0 : i32
    return %arg0, %arg2, %arg1 : i32, i32, i32
  }
  func.func @transform_1(%arg0: i32, %arg1: i32, %arg2: i32) -> (i32, i32, i32) {
    %c0_i32 = arith.constant 0 : i32
    %c0_i32_0 = arith.constant 0 : i32
    return %arg0, %c0_i32, %arg1 : i32, i32, i32
  }
}

</mosaic_0001>

<llo_original>
// kernel: tpu_custom_call.1
$region0: #{tpu_custom_call.1}
  #allocation0 [shape = 'u32[]', space=smem, size = 0x4, offset = 0x4, fixed_abs, tag = 'smem constant byte address 0x4 - core index']
  #allocation1 [shape = 'u32[72,128]{1,0:T(1,128)}', space=vmem, size = 0x9000, scoped, tag = 'internal scratch']
  #allocation2 [shape = 'f32[2,1,32]{2,1,0:T(1,128)}', space=vmem, size = 0x400, scoped, tag = 'scratch operand']
  #allocation3 [shape = 'f32[2,1,32]{2,1,0:T(1,128)}', space=vmem, size = 0x400, scoped, tag = 'scratch operand']
  %s0 = inlined_call_operand.hbm [shape: f32[2,8,32], index: 0, kind: input, shape index: {}]
  %s1 = inlined_call_operand.hbm [shape: f32[2,1,32], index: 1, kind: output, shape index: {}]
  %s2 = sld [smem:[#allocation0]]
  $region26: #{tpu_custom_call.1} parent=0
    _
  %s4 = ssub.s32 1, %s2
  %s5 = scalar_select 0, %s4, %s2
  $region1: #{tpu_custom_call.1} parent=0
    #allocation4 [shape = 'u8[8192]{0}', space=vmem, size = 0x2000, scoped, tag = 'input window, operand 0, single buffered']
    #allocation5 [shape = 's32[1]{0}', space=sflag, size = 0x4, scoped, tag = 'scoped memory for tpu_custom_call.1']
    #allocation6 [shape = 's32[1]{0}', space=sflag, size = 0x4, scoped, tag = 'scoped memory for tpu_custom_call.1']
    #allocation7 [shape = 'u8[1024]{0}', space=vmem, size = 0x400, scoped, tag = 'output window, operand 0, single buffered']
    %6 = vsyncpa [#allocation5], 0
    %7 = vsyncpa [#allocation6], 0
    // Predicated region
    $region2: #{tpu_custom_call.1} parent=1 // pred_check
      _
    $region3: #{tpu_custom_call.1} parent=1 // pred_check_branch
      %9 = sbr.rel (0) target = $region5
    $region4: #{tpu_custom_call.1} parent=1 // pred_region
      %11 = vsyncadd [#allocation5], 0
      %s12 = sshll.u32 %s0, 4
      %s13 = int_to_ptr.hbm [resolvable:$true] %s12
      %s14 = sshll.u32 [#allocation4], 4
      %s15 = int_to_ptr.vmem [resolvable:$true] %s14
      %20 = dma.hbm_to_vmem [thread:$0]  %s13, 256, %s15, [#allocation5], 128, 128, 8
    $region5: #{tpu_custom_call.1} parent=1 // pred_fallthru
      _
    // Predicated region
    $region6: #{tpu_custom_call.1} parent=1 // pred_check
      _
    $region7: #{tpu_custom_call.1} parent=1 // pred_check_branch
      %22 = sbr.rel (0) target = $region9
    $region8: #{tpu_custom_call.1} parent=1 // pred_region
      %24 = dma.done [#allocation5], 256
    $region9: #{tpu_custom_call.1} parent=1 // pred_fallthru
      _
    %p25 = scmp.eq.s32.totalorder 0, 0
    // Predicated region
    $region10: #{tpu_custom_call.1} parent=1 // pred_check
      %p26 = pneg %p25
    $region11: #{tpu_custom_call.1} parent=1 // pred_check_branch
      %28 = sbr.rel (%p26) target = $region13
    $region12: #{tpu_custom_call.1} parent=1 // pred_region
      %vm29 = vcmask 253952
      %30 = vst.msk [vmem:[#allocation2] sm:$0x1] %vm29, 0.0
      %31 = vst.msk [vmem:[#allocation2 + $0x1] sm:$0x1] %vm29, 0.0
      %32 = vst.msk [vmem:[#allocation3] sm:$0x1] %vm29, 0.0
      %33 = vst.msk [vmem:[#allocation3 + $0x1] sm:$0x1] %vm29, 0.0
    $region13: #{tpu_custom_call.1} parent=1 // pred_fallthru
      _
    %v34 = vld [vmem:[#allocation4] sm:$0xff]
    %v35 = vld [vmem:[#allocation4 + $0x8] sm:$0xff]
    %v36 = vld [vmem:[#allocation2] sm:$0x1]
    %v37 = vld [vmem:[#allocation2 + $0x1] sm:$0x1]
    %v38 = vmul.f32 %v34, %v34
    %v39 = vmul.f32 %v35, %v35
    %vm40 = vcmask 261120
    %v41 = vsel %vm40, %v38, 0.0
    %v42 = vrot.slane %v41, 4
    %v43 = vadd.f32 %v41, %v42
    %v44 = vrot.slane %v43, 2
    %v45 = vadd.f32 %v43, %v44
    %v46 = vrot.slane %v45, 1
    %v47 = vadd.f32 %v45, %v46
    %v48 = vsel %vm40, %v39, 0.0
    %v49 = vrot.slane %v48, 4
    %v50 = vadd.f32 %v48, %v49
    %v51 = vrot.slane %v50, 2
    %v52 = vadd.f32 %v50, %v51
    %v53 = vrot.slane %v52, 1
    %v54 = vadd.f32 %v52, %v53
    %v55 = vadd.f32 %v36, %v47
    %v56 = vadd.f32 %v37, %v54
    %vm57 = vcmask 253952
    %58 = vst.msk [vmem:[#allocation2] sm:$0x1] %vm57, %v55
    %59 = vst.msk [vmem:[#allocation2 + $0x1] sm:$0x1] %vm57, %v56
    %v60 = vld [vmem:[#allocation3] sm:$0x1]
    %v61 = vld [vmem:[#allocation3 + $0x1] sm:$0x1]
    %v62 = vsel %vm40, %v34, 0.0
    %v63 = vrot.slane %v62, 4
    %v64 = vadd.f32 %v62, %v63
    %v65 = vrot.slane %v64, 2
    %v66 = vadd.f32 %v64, %v65
    %v67 = vrot.slane %v66, 1
    %v68 = vadd.f32 %v66, %v67
    %v69 = vsel %vm40, %v35, 0.0
    %v70 = vrot.slane %v69, 4
    %v71 = vadd.f32 %v69, %v70
    %v72 = vrot.slane %v71, 2
    %v73 = vadd.f32 %v71, %v72
    %v74 = vrot.slane %v73, 1
    %v75 = vadd.f32 %v73, %v74
    %v76 = vadd.f32 %v60, %v68
    %v77 = vadd.f32 %v61, %v75
    %78 = vst.msk [vmem:[#allocation3] sm:$0x1] %vm57, %v76
    %79 = vst.msk [vmem:[#allocation3 + $0x1] sm:$0x1] %vm57, %v77
    // Predicated region
    $region14: #{tpu_custom_call.1} parent=1 // pred_check
      %p80 = pneg %p25
    $region15: #{tpu_custom_call.1} parent=1 // pred_check_branch
      %82 = sbr.rel (%p80) target = $region17
    $region16: #{tpu_custom_call.1} parent=1 // pred_region
      %v83 = vld [vmem:[#allocation2] sm:$0x1]
      %v84 = vld [vmem:[#allocation2 + $0x1] sm:$0x1]
      %v85 = vld [vmem:[#allocation3] sm:$0x1]
      %v86 = vld [vmem:[#allocation3 + $0x1] sm:$0x1]
      %v87 = vrcp.pop %v85
      %v88 = vmul.f32 %v85, %v87
      %v89 = vsub.f32 1.0, %v88
      %v90 = vmul.f32 %v87, %v89
      %v91 = vadd.f32 %v87, %v90
      %vm92 = vweird.f32 %v85
      %vm93 = vweird.f32 %v87
      %vm94 = vmor %vm92, %vm93
      %v95 = vsel %vm94, %v87, %v91
      %v96 = vand.u32 2147483647, %v85
      %vm97 = vcmp.eq.f32.partialorder %v96, 8.507059e+37
      %v98 = vand.u32 %v85, 2147483648
      %v99 = vor.u32 1.1754944e-38, %v98
      %v100 = vsel %vm97, %v99, %v95
      %v101 = vmul.f32 %v83, %v100
      %v102 = vrcp.pop %v86
      %v103 = vmul.f32 %v86, %v102
      %v104 = vsub.f32 1.0, %v103
      %v105 = vmul.f32 %v102, %v104
      %v106 = vadd.f32 %v102, %v105
      %vm107 = vweird.f32 %v86
      %vm108 = vweird.f32 %v102
      %vm109 = vmor %vm107, %vm108
      %v110 = vsel %vm109, %v102, %v106
      %v111 = vand.u32 2147483647, %v86
      %vm112 = vcmp.eq.f32.partialorder %v111, 8.507059e+37
      %v113 = vand.u32 %v86, 2147483648
      %v114 = vor.u32 1.1754944e-38, %v113
      %v115 = vsel %vm112, %v114, %v110
      %v116 = vmul.f32 %v84, %v115
      %117 = vst.msk [vmem:[#allocation7] sm:$0x1] %vm57, %v101
      %118 = vst.msk [vmem:[#allocation7 + $0x1] sm:$0x1] %vm57, %v116
    $region17: #{tpu_custom_call.1} parent=1 // pred_fallthru
      _
    // Predicated region
    $region18: #{tpu_custom_call.1} parent=1 // pred_check
      _
    $region19: #{tpu_custom_call.1} parent=1 // pred_check_branch
      %120 = sbr.rel (0) target = $region21
    $region20: #{tpu_custom_call.1} parent=1 // pred_region
      %122 = vsyncadd [#allocation6], 0
      %s123 = sshll.u32 [#allocation7], 4
      %s124 = int_to_ptr.vmem [resolvable:$true] %s123
      %s125 = sshll.u32 %s1, 4
      %s126 = int_to_ptr.hbm [resolvable:$true] %s125
      %131 = dma.vmem_to_hbm [thread:$0]  %s124, 32, %s126, [#allocation6], 16, 16, 1
    $region21: #{tpu_custom_call.1} parent=1 // pred_fallthru
      _
    // Predicated region
    $region22: #{tpu_custom_call.1} parent=1 // pred_check
      _
    $region23: #{tpu_custom_call.1} parent=1 // pred_check_branch
      %133 = sbr.rel (0) target = $region25
    $region24: #{tpu_custom_call.1} parent=1 // pred_region
      %135 = dma.done [#allocation6], 32
    $region25: #{tpu_custom_call.1} parent=1 // pred_fallthru
      _
    %136 = vsyncpa [#allocation5], 1
    %137 = vsyncpa [#allocation6], 1

</llo_original>
